<compile_context>
chip_gen: v6e
topology: v6e:2x2x1
jax: 0.10.0
libtpu: 0.0.40
codegen_flags: <defaults>
</compile_context>

<pallas_src>
import functools

import jax
import jax.numpy as jnp
from jax.experimental import pallas as pl
from jax.experimental.pallas import tpu as pltpu


LN_EPS = 1e-5
LANE = 128
SUBLANE = 8


def _round_up(n, m):
    return ((n + m - 1) // m) * m


def _cdiv(a, b):
    return (a + b - 1) // b


# -----------------------------------------------------------------------------
# Kernel
# -----------------------------------------------------------------------------
def _make_kernel(hidden_true):
    inv_h = 1.0 / float(hidden_true)   # true H divisor (H may be lane-padded)

    def kernel(x_ref, w1_ref, ln_ref, w2_ref, b2_ref, out_ref):
        # ---- Linear(in_channels -> hidden) on the MXU ----
        x = x_ref[...].astype(jnp.float32)
        h = jnp.dot(x, w1_ref[...], preferred_element_type=jnp.float32)
        h = h + ln_ref[0:1, :]                      # bias1 (padded lanes stay 0)

        # ---- LayerNorm(H_true): E[x^2]-mean^2 with explicit 1/H_true divisor.
        # Two independent row reductions (no reduce->center->reduce chain); the
        # zero-padded lanes of h contribute 0 to both sums.
        sum_h = jnp.sum(h, axis=-1, keepdims=True)
        sum_h2 = jnp.sum(h * h, axis=-1, keepdims=True)
        mean = sum_h * inv_h
        var = jnp.maximum(sum_h2 * inv_h - mean * mean, 0.0)
        inv_std = jax.lax.rsqrt(var + LN_EPS)
        hn = (h - mean) * inv_std * ln_ref[1:2, :] + ln_ref[2:3, :]  # gamma, beta

        # ---- ReLU ----
        hr = jnp.maximum(hn, 0.0)

        # ---- Linear(hidden -> out_channels), lane-padded N ----
        y = jnp.dot(hr, w2_ref[...], preferred_element_type=jnp.float32)
        out_ref[...] = (y + b2_ref[...]).astype(out_ref.dtype)

    return kernel


# -----------------------------------------------------------------------------
# One-time parameter preparation (hoisted out of the per-call path)
# -----------------------------------------------------------------------------
def prepare_traj_decoder_params(w1, b1, gamma, beta, w2, b2):
    """Lane-pad H and Cout, merge b1/gamma/beta into one (8, H_p) block."""
    Cin, H = w1.shape
    assert w2.shape[0] == H
    Cout = w2.shape[1]
    H_p = _round_up(max(H, LANE), LANE)
    Cout_p = _round_up(max(Cout, LANE), LANE)

    w1_p = jnp.pad(w1.astype(jnp.float32), ((0, 0), (0, H_p - H)))
    w2_p = jnp.pad(w2.astype(jnp.float32), ((0, H_p - H), (0, Cout_p - Cout)))
    b2_p = jnp.pad(b2.reshape(1, Cout).astype(jnp.float32),
                   ((0, 0), (0, Cout_p - Cout)))

    # One (8, H_p) block -> single DMA / double-buffer instead of three.
    ln = jnp.zeros((SUBLANE, H_p), jnp.float32)
    ln = ln.at[0, :H].set(b1.reshape(H).astype(jnp.float32))
    ln = ln.at[1, :H].set(gamma.reshape(H).astype(jnp.float32))
    ln = ln.at[2, :H].set(beta.reshape(H).astype(jnp.float32))

    return {"w1": w1_p, "ln": ln, "w2": w2_p, "b2": b2_p,
            "in_channels": Cin, "hidden": H, "out_channels": Cout}


# -----------------------------------------------------------------------------
# VMEM budgeting (per chip generation)
# -----------------------------------------------------------------------------
def _vmem_cap_bytes():
    # 75% of physical VMEM per core: ~48 MiB on v7x, ~96 MiB on v5e/v6e.
    try:
        phys = int(pltpu.get_tpu_info().vmem_capacity_bytes)
    except Exception:
        phys = 64 * 1024 * 1024          # conservative fallback (v7x size)
    return (3 * phys) // 4


def _est_vmem_bytes(tile_b, cin, h_p, cout_p):
    dbl = 2                                             # BlockSpec double-buffering
    fixed = dbl * (cin * h_p + SUBLANE * h_p + h_p * cout_p + SUBLANE * cout_p)
    tiles = dbl * tile_b * (cin + cout_p)               # x in + y out
    live = 3 * tile_b * h_p                             # h / hn / hr temporaries
    return 4 * (fixed + tiles + live)


# -----------------------------------------------------------------------------
# Forward pass
# -----------------------------------------------------------------------------
def traj_decoder_apply(x, params, *, tile_b=None):
    B, Cin = x.shape
    assert Cin == params["in_channels"]
    H = params["hidden"]
    Cout = params["out_channels"]
    H_p = params["w1"].shape[1]
    Cout_p = params["w2"].shape[1]

    # Batch tile: >= 2 steps when B > 8 (v7x megacore needs >= 2 grid steps),
    # >= ceil(B/512) steps so DMA/compute can pipeline, and balanced so batch
    # padding waste is < 8 rows per step.
    if tile_b is None:
        if B <= SUBLANE:
            tile_b = SUBLANE
        else:
            n_steps = max(2, _cdiv(B, 512))
            tile_b = _round_up(_cdiv(B, n_steps), SUBLANE)
    tile_b = max(SUBLANE, _round_up(int(tile_b), SUBLANE))

    # Shrink the tile if the VMEM estimate exceeds the per-generation budget.
    cap = _vmem_cap_bytes()
    while tile_b > SUBLANE and _est_vmem_bytes(tile_b, Cin, H_p, Cout_p) > cap:
        tile_b = max(SUBLANE, _round_up(tile_b // 2, SUBLANE))

    grid_b = _cdiv(B, tile_b)
    B_pad = grid_b * tile_b
    if B_pad != B:
        x = jnp.pad(x, ((0, B_pad - B), (0, 0)))   # zero rows, sliced off below

    est = _est_vmem_bytes(tile_b, Cin, H_p, Cout_p)
    vmem_limit = None
    if est > 12 * 1024 * 1024:                     # v5e default scoped VMEM is 16 MiB
        vmem_limit = min(_round_up(est * 5 // 4, 1024), cap)

    row_map = lambda i: (i, 0)
    full_map = lambda i: (0, 0)

    out = pl.pallas_call(
        _make_kernel(H),
        out_shape=jax.ShapeDtypeStruct((B_pad, Cout_p), x.dtype),
        grid_spec=pltpu.PrefetchScalarGridSpec(
            num_scalar_prefetch=0,
            grid=(grid_b,),
            in_specs=[
                pl.BlockSpec((tile_b, Cin), row_map),    # x tile (batch-tiled)
                pl.BlockSpec((Cin, H_p), full_map),      # W1 (grid-invariant)
                pl.BlockSpec((SUBLANE, H_p), full_map),  # [b1; gamma; beta]
                pl.BlockSpec((H_p, Cout_p), full_map),   # W2 (lane-padded)
                pl.BlockSpec((1, Cout_p), full_map),     # b2 (lane-padded)
            ],
            out_specs=pl.BlockSpec((tile_b, Cout_p), row_map),
        ),
        compiler_params=pltpu.CompilerParams(
            dimension_semantics=("parallel",),   # batch axis shards across TCs (v7x)
            vmem_limit_bytes=vmem_limit,
        ),
    )(x, params["w1"], params["ln"], params["w2"], params["b2"])

    # Slice off batch padding and the zero-padded output columns.
    return out[:B, :Cout]


def traj_decoder(x, w1, b1, gamma, beta, w2, b2, *, tile_b=None):
    """Convenience wrapper (prefer prepare_traj_decoder_params + apply)."""
    return traj_decoder_apply(x, prepare_traj_decoder_params(w1, b1, gamma,
                                                             beta, w2, b2),
                              tile_b=tile_b)


# -----------------------------------------------------------------------------
# Reference / test harness
# -----------------------------------------------------------------------------
def make_params(key, in_channels, hidden_unit, out_channels):
    """Deterministic synthetic parameters (PyTorch-like uniform init)."""
    k1, k2, k3, k4 = jax.random.split(key, 4)
    bound1 = 1.0 / (in_channels ** 0.5)
    bound2 = 1.0 / (hidden_unit ** 0.5)
    w1 = jax.random.uniform(k1, (in_channels, hidden_unit), jnp.float32,
                            -bound1, bound1)
    b1 = jax.random.uniform(k2, (1, hidden_unit), jnp.float32, -bound1, bound1)
    gamma = jnp.ones((1, hidden_unit), jnp.float32)
    beta = jnp.zeros((1, hidden_unit), jnp.float32)
    w2 = jax.random.uniform(k3, (hidden_unit, out_channels), jnp.float32,
                            -bound2, bound2)
    b2 = jax.random.uniform(k4, (1, out_channels), jnp.float32, -bound2, bound2)
    return w1, b1, gamma, beta, w2, b2


def reference(x, w1, b1, gamma, beta, w2, b2):
    h = x @ w1 + b1
    mean = jnp.mean(h, axis=-1, keepdims=True)
    var = jnp.mean((h - mean) ** 2, axis=-1, keepdims=True)
    hn = (h - mean) / jnp.sqrt(var + LN_EPS) * gamma + beta
    hr = jnp.maximum(hn, 0.0)
    return hr @ w2 + b2


if __name__ == "__main__":
    # Small shapes consistent with TrajDecoder(in_channels, hidden_unit, out_channels)
    B, in_channels, hidden_unit, out_channels = 16, 32, 64, 60

    key = jax.random.PRNGKey(0)
    kx, kp = jax.random.split(key)
    x = jax.random.normal(kx, (B, in_channels), jnp.float32)
    raw_params = make_params(kp, in_channels, hidden_unit, out_channels)

    # One-time parameter prep (cached with the weights), then the fused kernel.
    prepared = prepare_traj_decoder_params(*raw_params)
    run = jax.jit(functools.partial(traj_decoder_apply, params=prepared))

    out = jax.block_until_ready(run(x))

    ref = reference(x, *raw_params)
    assert out.shape == (B, out_channels)
    assert jnp.allclose(out, ref, atol=1e-4, rtol=1e-4), "mismatch vs reference"

    print("KERNEL_OK")
</pallas_src>

<mosaic_0001>
module attributes {stable_mosaic.version = 11 : i64} {
  func.func @kernel(%arg0: i32, %arg1: memref<8x32xf32, #tpu.memory_space<vmem>>, %arg2: memref<32x128xf32, #tpu.memory_space<vmem>>, %arg3: memref<8x128xf32, #tpu.memory_space<vmem>>, %arg4: memref<128x128xf32, #tpu.memory_space<vmem>>, %arg5: memref<1x128xf32, #tpu.memory_space<vmem>>, %arg6: memref<8x128xf32, #tpu.memory_space<vmem>>) attributes {dimension_semantics = [#tpu.dimension_semantics<parallel>], iteration_bounds = array<i64: 2>, scalar_prefetch = 0 : i64, scratch_operands = 0 : i64, tpu.core_type = #tpu.core_type<tc>, window_params = [{transform_indices = @transform_0, window_bounds = array<i64: 8, 32>}, {pipeline_mode = #tpu.pipeline_mode<synchronous>, transform_indices = @transform_1, window_bounds = array<i64: 32, 128>}, {pipeline_mode = #tpu.pipeline_mode<synchronous>, transform_indices = @transform_2, window_bounds = array<i64: 8, 128>}, {pipeline_mode = #tpu.pipeline_mode<synchronous>, transform_indices = @transform_3, window_bounds = array<i64: 128, 128>}, {pipeline_mode = #tpu.pipeline_mode<synchronous>, transform_indices = @transform_4, window_bounds = array<i64: 1, 128>}, {transform_indices = @transform_5, window_bounds = array<i64: 8, 128>}]} {
    %c0 = arith.constant 0 : index
    %c0_0 = arith.constant 0 : index
    %0 = vector.load %arg1[%c0, %c0_0] : memref<8x32xf32, #tpu.memory_space<vmem>>, vector<8x32xf32>
    %c0_1 = arith.constant 0 : index
    %c0_2 = arith.constant 0 : index
    %1 = vector.load %arg2[%c0_1, %c0_2] : memref<32x128xf32, #tpu.memory_space<vmem>>, vector<32x128xf32>
    %cst = arith.constant dense<0.000000e+00> : vector<8x128xf32>
    %2 = tpu.matmul %0, %1, %cst {dimension_numbers = #tpu.dot_dimension_numbers<[1], [0], [0], [1], [0, 0, 1, 1], [], []>} : vector<8x32xf32>, vector<32x128xf32>, vector<8x128xf32> -> vector<8x128xf32>
    %c0_3 = arith.constant 0 : index
    %c0_4 = arith.constant 0 : index
    %3 = vector.load %arg3[%c0_3, %c0_4] : memref<8x128xf32, #tpu.memory_space<vmem>>, vector<1x128xf32>
    %4 = vector.broadcast %3 : vector<1x128xf32> to vector<8x128xf32>
    %5 = arith.addf %2, %4 : vector<8x128xf32>
    %cst_5 = arith.constant dense<0.000000e+00> : vector<8xf32>
    %6 = vector.multi_reduction <add>, %5, %cst_5 [1] : vector<8x128xf32> to vector<8xf32>
    %7 = vector.shape_cast %6 : vector<8xf32> to vector<8x1xf32>
    %8 = arith.mulf %5, %5 : vector<8x128xf32>
    %cst_6 = arith.constant dense<0.000000e+00> : vector<8xf32>
    %9 = vector.multi_reduction <add>, %8, %cst_6 [1] : vector<8x128xf32> to vector<8xf32>
    %10 = vector.shape_cast %9 : vector<8xf32> to vector<8x1xf32>
    %cst_7 = arith.constant 1.562500e-02 : f32
    %11 = vector.broadcast %cst_7 : f32 to vector<8x1xf32>
    %12 = arith.mulf %7, %11 : vector<8x1xf32>
    %cst_8 = arith.constant 1.562500e-02 : f32
    %13 = vector.broadcast %cst_8 : f32 to vector<8x1xf32>
    %14 = arith.mulf %10, %13 : vector<8x1xf32>
    %15 = arith.mulf %12, %12 : vector<8x1xf32>
    %16 = arith.subf %14, %15 : vector<8x1xf32>
    %cst_9 = arith.constant 0.000000e+00 : f32
    %17 = vector.broadcast %cst_9 : f32 to vector<8x1xf32>
    %18 = arith.maximumf %16, %17 : vector<8x1xf32>
    %cst_10 = arith.constant 9.99999974E-6 : f32
    %19 = vector.broadcast %cst_10 : f32 to vector<8x1xf32>
    %20 = arith.addf %18, %19 : vector<8x1xf32>
    %21 = math.rsqrt %20 : vector<8x1xf32>
    %22 = vector.broadcast %12 : vector<8x1xf32> to vector<8x128xf32>
    %23 = arith.subf %5, %22 : vector<8x128xf32>
    %24 = vector.broadcast %21 : vector<8x1xf32> to vector<8x128xf32>
    %25 = arith.mulf %23, %24 : vector<8x128xf32>
    %c1 = arith.constant 1 : index
    %c0_11 = arith.constant 0 : index
    %26 = vector.load %arg3[%c1, %c0_11] : memref<8x128xf32, #tpu.memory_space<vmem>>, vector<1x128xf32>
    %27 = vector.broadcast %26 : vector<1x128xf32> to vector<8x128xf32>
    %28 = arith.mulf %25, %27 : vector<8x128xf32>
    %c2 = arith.constant 2 : index
    %c0_12 = arith.constant 0 : index
    %29 = vector.load %arg3[%c2, %c0_12] : memref<8x128xf32, #tpu.memory_space<vmem>>, vector<1x128xf32>
    %30 = vector.broadcast %29 : vector<1x128xf32> to vector<8x128xf32>
    %31 = arith.addf %28, %30 : vector<8x128xf32>
    %cst_13 = arith.constant 0.000000e+00 : f32
    %32 = vector.broadcast %cst_13 : f32 to vector<8x128xf32>
    %33 = arith.maximumf %31, %32 : vector<8x128xf32>
    %c0_14 = arith.constant 0 : index
    %c0_15 = arith.constant 0 : index
    %34 = vector.load %arg4[%c0_14, %c0_15] : memref<128x128xf32, #tpu.memory_space<vmem>>, vector<128x128xf32>
    %cst_16 = arith.constant dense<0.000000e+00> : vector<8x128xf32>
    %35 = tpu.matmul %33, %34, %cst_16 {dimension_numbers = #tpu.dot_dimension_numbers<[1], [0], [0], [1], [0, 0, 1, 1], [], []>} : vector<8x128xf32>, vector<128x128xf32>, vector<8x128xf32> -> vector<8x128xf32>
    %c0_17 = arith.constant 0 : index
    %c0_18 = arith.constant 0 : index
    %36 = vector.load %arg5[%c0_17, %c0_18] : memref<1x128xf32, #tpu.memory_space<vmem>>, vector<1x128xf32>
    %37 = vector.broadcast %36 : vector<1x128xf32> to vector<8x128xf32>
    %38 = arith.addf %35, %37 : vector<8x128xf32>
    %c0_19 = arith.constant 0 : index
    %c0_20 = arith.constant 0 : index
    %39 = vector.load %arg6[%c0_19, %c0_20] : memref<8x128xf32, #tpu.memory_space<vmem>>, vector<8x128xf32>
    tpu.vector_store %arg6[%c0_19, %c0_20], %38 {strides = array<i32>} : memref<8x128xf32, #tpu.memory_space<vmem>>, vector<8x128xf32>,
    return
  }
  func.func @transform_0(%arg0: i32) -> (i32, i32) {
    %c0_i32 = arith.constant 0 : i32
    %c0_i32_0 = arith.constant 0 : i32
    return %arg0, %c0_i32 : i32, i32
  }
  func.func @transform_1(%arg0: i32) -> (i32, i32) {
    %c0_i32 = arith.constant 0 : i32
    %c0_i32_0 = arith.constant 0 : i32
    %c0_i32_1 = arith.constant 0 : i32
    return %c0_i32, %c0_i32_0 : i32, i32
  }
  func.func @transform_2(%arg0: i32) -> (i32, i32) {
    %c0_i32 = arith.constant 0 : i32
    %c0_i32_0 = arith.constant 0 : i32
    %c0_i32_1 = arith.constant 0 : i32
    return %c0_i32, %c0_i32_0 : i32, i32
  }
  func.func @transform_3(%arg0: i32) -> (i32, i32) {
    %c0_i32 = arith.constant 0 : i32
    %c0_i32_0 = arith.constant 0 : i32
    %c0_i32_1 = arith.constant 0 : i32
    return %c0_i32, %c0_i32_0 : i32, i32
  }
  func.func @transform_4(%arg0: i32) -> (i32, i32) {
    %c0_i32 = arith.constant 0 : i32
    %c0_i32_0 = arith.constant 0 : i32
    %c0_i32_1 = arith.constant 0 : i32
    return %c0_i32, %c0_i32_0 : i32, i32
  }
  func.func @transform_5(%arg0: i32) -> (i32, i32) {
    %c0_i32 = arith.constant 0 : i32
    %c0_i32_0 = arith.constant 0 : i32
    return %arg0, %c0_i32 : i32, i32
  }
}

</mosaic_0001>

<llo_original>
// kernel: traj_decoder_apply.1
$region0: #{traj_decoder_apply.1}
  #allocation0 [shape = 'u32[]', space=smem, size = 0x4, offset = 0x4, fixed_abs, tag = 'smem constant byte address 0x4 - core index']
  #allocation1 [shape = 'u32[144,128]{1,0:T(1,128)}', space=vmem, size = 0x12000, scoped, tag = 'internal scratch']
  %s0 = inlined_call_operand.hbm [shape: f32[16,32], index: 0, kind: input, shape index: {}]
  %s1 = inlined_call_operand.hbm [shape: f32[32,128], index: 1, kind: input, shape index: {}]
  %s2 = inlined_call_operand.hbm [shape: f32[8,128], index: 2, kind: input, shape index: {}]
  %s3 = inlined_call_operand.hbm [shape: f32[128,128], index: 3, kind: input, shape index: {}]
  %s4 = inlined_call_operand.vmem [shape: f32[1,128], index: 4, kind: input, shape index: {}]
  %s5 = inlined_call_operand.hbm [shape: f32[16,128], index: 5, kind: output, shape index: {}]
  %s6 = sld [smem:[#allocation0]]
  $region69: #{traj_decoder_apply.1} parent=0
    _
  %s8 = ssub.s32 1, %s6
  %s9 = scalar_select 0, %s8, %s6
  $region1: #{traj_decoder_apply.1} parent=0
    #allocation2 [shape = 'u8[8192]{0}', space=vmem, size = 0x2000, scoped, tag = 'input window, operand 0']
    #allocation3 [shape = 's32[2]{0}', space=sflag, size = 0x8, scoped, tag = 'scoped memory for traj_decoder_apply.1']
    #allocation4 [shape = 's32[2]{0}', space=sflag, size = 0x8, scoped, tag = 'scoped memory for traj_decoder_apply.1']
    #allocation5 [shape = 'u8[16384]{0}', space=vmem, size = 0x4000, scoped, tag = 'input window, operand 1, single buffered']
    #allocation6 [shape = 's32[1]{0}', space=sflag, size = 0x4, scoped, tag = 'scoped memory for traj_decoder_apply.1']
    #allocation7 [shape = 'u8[4096]{0}', space=vmem, size = 0x1000, scoped, tag = 'input window, operand 2, single buffered']
    #allocation8 [shape = 'u8[65536]{0}', space=vmem, size = 0x10000, scoped, tag = 'input window, operand 3, single buffered']
    #allocation9 [shape = 's32[1]{0}', space=sflag, size = 0x4, scoped, tag = 'scoped memory for traj_decoder_apply.1']
    #allocation10 [shape = 'u8[8192]{0}', space=vmem, size = 0x2000, scoped, tag = 'output window, operand 0']
    %10 = vsyncpa [#allocation3], 0
    %s11 = scalar_lea.sflag [#allocation3], 1
    %12 = vsyncpa %s11, 0
    %13 = vsyncpa [#allocation6], 0
    %14 = vsyncpa [#allocation9], 0
    %15 = vsyncpa [#allocation4], 0
    %s16 = scalar_lea.sflag [#allocation4], 1
    %17 = vsyncpa %s16, 0
    loop: start=0, step=1, limit=4
    $region2: #{traj_decoder_apply.1} parent=1 // loop_pre_header
      _
    $region3: #{traj_decoder_apply.1} parent=1 // loop_header
      %s19 = sphi 0, %s23
      %p20 = scmp.ge.s32.totalorder %s19, 4
      %s29 = sphi 0, %s31
      %s32 = sphi 0, %s29
      %s33 = sphi 0, %s32
      %s49 = sphi 0, %s33
      %s53 = sphi 0, %s53
      %s55 = sphi 0, %s53
      %s56 = sphi 0, %s55
      %s70 = sphi 0, %s56
      %s74 = sphi 0, %s74
      %s76 = sphi 0, %s74
      %s77 = sphi 0, %s76
      %s91 = sphi 0, %s77
      %s95 = sphi 0, %s95
      %s97 = sphi 0, %s95
      %s98 = sphi 0, %s97
      %s112 = sphi 0, %s98
      %s116 = sphi 0, %s116
      %s118 = sphi 0, %s116
      %s119 = sphi 0, %s118
      %s133 = sphi 0, %s119
      %s139 = sphi 0, %s141
      %s142 = sphi 0, %s139
      %s143 = sphi 0, %s142
      %s159 = sphi 0, %s143
    $region4: #{traj_decoder_apply.1} parent=1 // loop_header_branch
      %22 = sbr.rel (%p20) target = $region8
    $region5: #{traj_decoder_apply.1} parent=1 // loop_body
      %s24 = ssub.s32 %s19, 1
      %s25 = ssub.s32 %s19, 2
      %s26 = sadd.s32 %s19, 1
      %s27 = ssub.s32 %s19, %s26
      %p28 = scmp.eq.s32.totalorder %s27, 0
      %s30 = sadd.s32 %s29, 1
      %s31 = scalar_select %p28, %s29, %s30
      %p34 = pneg %p28
      %p35 = scmp.eq.s32.totalorder %s19, 1
      %p36 = por %p34, %p35
      %p37 = scmp.ne.s32.totalorder %s29, %s32
      %p38 = scmp.eq.s32.totalorder %s19, 0
      %p39 = por %p37, %p38
      %p40 = scmp.ne.s32.totalorder %s29, %s32
      %p41 = scmp.eq.s32.totalorder %s24, 1
      %p42 = por %p40, %p41
      %p43 = scmp.ne.s32.totalorder %s32, %s33
      %p44 = scmp.eq.s32.totalorder %s24, 0
      %p45 = por %p43, %p44
      %p46 = scmp.ne.s32.totalorder %s32, %s33
      %p47 = scmp.eq.s32.totalorder %s25, 1
      %p48 = por %p46, %p47
      %p50 = scmp.ne.s32.totalorder %s33, %s49
      %p51 = scmp.eq.s32.totalorder %s25, 0
      %p52 = por %p50, %p51
      %s54 = sadd.s32 %s53, 1
      %p57 = scmp.eq.s32.totalorder %s19, 1
      %p58 = scmp.ne.s32.totalorder %s53, %s55
      %p59 = scmp.eq.s32.totalorder %s19, 0
      %p60 = por %p58, %p59
      %p61 = scmp.ne.s32.totalorder %s53, %s55
      %p62 = scmp.eq.s32.totalorder %s24, 1
      %p63 = por %p61, %p62
      %p64 = scmp.ne.s32.totalorder %s55, %s56
      %p65 = scmp.eq.s32.totalorder %s24, 0
      %p66 = por %p64, %p65
      %p67 = scmp.ne.s32.totalorder %s55, %s56
      %p68 = scmp.eq.s32.totalorder %s25, 1
      %p69 = por %p67, %p68
      %p71 = scmp.ne.s32.totalorder %s56, %s70
      %p72 = scmp.eq.s32.totalorder %s25, 0
      %p73 = por %p71, %p72
      %s75 = sadd.s32 %s74, 1
      %p78 = scmp.eq.s32.totalorder %s19, 1
      %p79 = scmp.ne.s32.totalorder %s74, %s76
      %p80 = scmp.eq.s32.totalorder %s19, 0
      %p81 = por %p79, %p80
      %p82 = scmp.ne.s32.totalorder %s74, %s76
      %p83 = scmp.eq.s32.totalorder %s24, 1
      %p84 = por %p82, %p83
      %p85 = scmp.ne.s32.totalorder %s76, %s77
      %p86 = scmp.eq.s32.totalorder %s24, 0
      %p87 = por %p85, %p86
      %p88 = scmp.ne.s32.totalorder %s76, %s77
      %p89 = scmp.eq.s32.totalorder %s25, 1
      %p90 = por %p88, %p89
      %p92 = scmp.ne.s32.totalorder %s77, %s91
      %p93 = scmp.eq.s32.totalorder %s25, 0
      %p94 = por %p92, %p93
      %s96 = sadd.s32 %s95, 1
      %p99 = scmp.eq.s32.totalorder %s19, 1
      %p100 = scmp.ne.s32.totalorder %s95, %s97
      %p101 = scmp.eq.s32.totalorder %s19, 0
      %p102 = por %p100, %p101
      %p103 = scmp.ne.s32.totalorder %s95, %s97
      %p104 = scmp.eq.s32.totalorder %s24, 1
      %p105 = por %p103, %p104
      %p106 = scmp.ne.s32.totalorder %s97, %s98
      %p107 = scmp.eq.s32.totalorder %s24, 0
      %p108 = por %p106, %p107
      %p109 = scmp.ne.s32.totalorder %s97, %s98
      %p110 = scmp.eq.s32.totalorder %s25, 1
      %p111 = por %p109, %p110
      %p113 = scmp.ne.s32.totalorder %s98, %s112
      %p114 = scmp.eq.s32.totalorder %s25, 0
      %p115 = por %p113, %p114
      %s117 = sadd.s32 %s116, 1
      %p120 = scmp.eq.s32.totalorder %s19, 1
      %p121 = scmp.ne.s32.totalorder %s116, %s118
      %p122 = scmp.eq.s32.totalorder %s19, 0
      %p123 = por %p121, %p122
      %p124 = scmp.ne.s32.totalorder %s116, %s118
      %p125 = scmp.eq.s32.totalorder %s24, 1
      %p126 = por %p124, %p125
      %p127 = scmp.ne.s32.totalorder %s118, %s119
      %p128 = scmp.eq.s32.totalorder %s24, 0
      %p129 = por %p127, %p128
      %p130 = scmp.ne.s32.totalorder %s118, %s119
      %p131 = scmp.eq.s32.totalorder %s25, 1
      %p132 = por %p130, %p131
      %p134 = scmp.ne.s32.totalorder %s119, %s133
      %p135 = scmp.eq.s32.totalorder %s25, 0
      %p136 = por %p134, %p135
      %s137 = ssub.s32 %s19, %s26
      %p138 = scmp.eq.s32.totalorder %s137, 0
      %s140 = sadd.s32 %s139, 1
      %s141 = scalar_select %p138, %s139, %s140
      %p144 = pneg %p138
      %p145 = scmp.eq.s32.totalorder %s19, 1
      %p146 = por %p144, %p145
      %p147 = scmp.ne.s32.totalorder %s139, %s142
      %p148 = scmp.eq.s32.totalorder %s19, 0
      %p149 = por %p147, %p148
      %p150 = scmp.ne.s32.totalorder %s139, %s142
      %p151 = scmp.eq.s32.totalorder %s24, 1
      %p152 = por %p150, %p151
      %p153 = scmp.ne.s32.totalorder %s142, %s143
      %p154 = scmp.eq.s32.totalorder %s24, 0
      %p155 = por %p153, %p154
      %p156 = scmp.ne.s32.totalorder %s142, %s143
      %p157 = scmp.eq.s32.totalorder %s25, 1
      %p158 = por %p156, %p157
      %p160 = scmp.ne.s32.totalorder %s143, %s159
      %p161 = scmp.eq.s32.totalorder %s25, 0
      %p162 = por %p160, %p161
      %p163 = scmp.le.s32.totalorder 1, %s19
      %p164 = scmp.lt.s32.totalorder %s19, 3
      %p165 = pnand %p163, %p164
      %p166 = pneg %p165
      // Predicated region
      $region9: #{traj_decoder_apply.1} parent=5 // pred_check
        _
      $region10: #{traj_decoder_apply.1} parent=5 // pred_check_branch
        %168 = sbr.rel (%p165) target = $region12
      $region11: #{traj_decoder_apply.1} parent=5 // pred_region
        %s169 = ssub.s32 %s19, 1
        // Predicated region
        $region13: #{traj_decoder_apply.1} parent=11 // pred_check
          %p170 = pneg %p66
        $region14: #{traj_decoder_apply.1} parent=11 // pred_check_branch
          %172 = sbr.rel (%p170) target = $region16
        $region15: #{traj_decoder_apply.1} parent=11 // pred_region
          %s174 = ssub.s32 512, 512
          %175 = vsyncadd [#allocation6], %s174
          %s176 = sshll.u32 [#allocation5], 4
          %s177 = int_to_ptr.vmem [resolvable:$true] %s176
          %182 = dma.hbm_to_vmem [thread:$0]  %s1, 512, %s177, [#allocation6], 128, 128, 8
        $region16: #{traj_decoder_apply.1} parent=11 // pred_fallthru
          _
        // Predicated region
        $region17: #{traj_decoder_apply.1} parent=11 // pred_check
          %p183 = pneg %p87
        $region18: #{traj_decoder_apply.1} parent=11 // pred_check_branch
          %185 = sbr.rel (%p183) target = $region20
        $region19: #{traj_decoder_apply.1} parent=11 // pred_region
          %s187 = ssub.s32 128, 128
          %188 = vsyncadd [#allocation6], %s187
          %s190 = sshll.u32 [#allocation7], 4
          %s191 = int_to_ptr.vmem [resolvable:$true] %s190
          %193 = dma.hbm_to_vmem [thread:$0]  %s2, 128, %s191, [#allocation6]
        $region20: #{traj_decoder_apply.1} parent=11 // pred_fallthru
          _
        // Predicated region
        $region21: #{traj_decoder_apply.1} parent=11 // pred_check
          %p194 = pneg %p108
        $region22: #{traj_decoder_apply.1} parent=11 // pred_check_branch
          %196 = sbr.rel (%p194) target = $region24
        $region23: #{traj_decoder_apply.1} parent=11 // pred_region
          %s198 = ssub.s32 2048, 2048
          %199 = vsyncadd [#allocation9], %s198
          %s200 = sshll.u32 [#allocation8], 4
          %s201 = int_to_ptr.vmem [resolvable:$true] %s200
          %206 = dma.hbm_to_vmem [thread:$0]  %s3, 2048, %s201, [#allocation9], 128, 128, 8
        $region24: #{traj_decoder_apply.1} parent=11 // pred_fallthru
          _
        // Predicated region
        $region25: #{traj_decoder_apply.1} parent=11 // pred_check
          %p207 = pneg %p129
        $region26: #{traj_decoder_apply.1} parent=11 // pred_check_branch
          %209 = sbr.rel (%p207) target = $region28
        $region27: #{traj_decoder_apply.1} parent=11 // pred_region
          _
        $region28: #{traj_decoder_apply.1} parent=11 // pred_fallthru
          _
      $region12: #{traj_decoder_apply.1} parent=5 // pred_fallthru
        _
      %p210 = scmp.lt.s32.totalorder %s19, 2
      // Predicated region
      $region29: #{traj_decoder_apply.1} parent=5 // pred_check
        %p211 = pneg %p210
      $region30: #{traj_decoder_apply.1} parent=5 // pred_check_branch
        %213 = sbr.rel (%p211) target = $region32
      $region31: #{traj_decoder_apply.1} parent=5 // pred_region
        // Predicated region
        $region33: #{traj_decoder_apply.1} parent=31 // pred_check
          %p214 = pneg %p39
        $region34: #{traj_decoder_apply.1} parent=31 // pred_check_branch
          %216 = sbr.rel (%p214) target = $region36
        $region35: #{traj_decoder_apply.1} parent=31 // pred_region
          %s217 = sand.u32 %s29, 1
          %s218 = scalar_lea.sflag [#allocation3], %s217
          %s219 = sand.u32 %s29, 1
          %s220 = smul.addr %s219, 8
          %s221 = scalar_lea.vmem [#allocation2], %s220
          %s223 = ssub.s32 128, 128
          %224 = vsyncadd %s218, %s223
          %s225 = smul.addr %s19, 128
          %s226 = scalar_lea.hbm %s0, %s225
          %s228 = sshll.u32 %s221, 4
          %s229 = int_to_ptr.vmem [resolvable:$true] %s228
          %231 = dma.hbm_to_vmem [thread:$0]  %s226, 128, %s229, %s218
        $region36: #{traj_decoder_apply.1} parent=31 // pred_fallthru
          _
      $region32: #{traj_decoder_apply.1} parent=5 // pred_fallthru
        _
      %p232 = scmp.le.s32.totalorder 1, %s19
      %p233 = scmp.lt.s32.totalorder %s19, 3
      %p234 = pnand %p232, %p233
      %p235 = pneg %p234
      // Predicated region
      $region37: #{traj_decoder_apply.1} parent=5 // pred_check
        _
      $region38: #{traj_decoder_apply.1} parent=5 // pred_check_branch
        %237 = sbr.rel (%p234) target = $region40
      $region39: #{traj_decoder_apply.1} parent=5 // pred_region
        %s238 = ssub.s32 %s19, 1
        %s239 = sand.u32 %s32, 1
        %s240 = scalar_lea.sflag [#allocation3], %s239
        %s241 = sand.u32 %s32, 1
        %s242 = smul.addr %s241, 8
        %s243 = scalar_lea.vmem [#allocation2], %s242
        // Predicated region
        $region41: #{traj_decoder_apply.1} parent=39 // pred_check
          %p244 = pneg %p45
        $region42: #{traj_decoder_apply.1} parent=39 // pred_check_branch
          %246 = sbr.rel (%p244) target = $region44
        $region43: #{traj_decoder_apply.1} parent=39 // pred_region
          %247 = dma.done %s240, 128
        $region44: #{traj_decoder_apply.1} parent=39 // pred_fallthru
          _
        // Predicated region
        $region45: #{traj_decoder_apply.1} parent=39 // pred_check
          %p248 = pneg %p66
        $region46: #{traj_decoder_apply.1} parent=39 // pred_check_branch
          %250 = sbr.rel (%p248) target = $region48
        $region47: #{traj_decoder_apply.1} parent=39 // pred_region
          %251 = dma.done [#allocation6], 512
        $region48: #{traj_decoder_apply.1} parent=39 // pred_fallthru
          _
        // Predicated region
        $region49: #{traj_decoder_apply.1} parent=39 // pred_check
          %p252 = pneg %p87
        $region50: #{traj_decoder_apply.1} parent=39 // pred_check_branch
          %254 = sbr.rel (%p252) target = $region52
        $region51: #{traj_decoder_apply.1} parent=39 // pred_region
          %255 = dma.done [#allocation6], 128
        $region52: #{traj_decoder_apply.1} parent=39 // pred_fallthru
          _
        // Predicated region
        $region53: #{traj_decoder_apply.1} parent=39 // pred_check
          %p256 = pneg %p108
        $region54: #{traj_decoder_apply.1} parent=39 // pred_check_branch
          %258 = sbr.rel (%p256) target = $region56
        $region55: #{traj_decoder_apply.1} parent=39 // pred_region
          %259 = dma.done [#allocation9], 2048
        $region56: #{traj_decoder_apply.1} parent=39 // pred_fallthru
          _
        %s260 = sand.u32 %s32, 1
        %s261 = scalar_lea.sflag [#allocation3], %s260
        %s262 = sand.u32 %s32, 1
        %s263 = smul.addr %s262, 8
        %s264 = scalar_lea.vmem [#allocation2], %s263
        %p265 = pneg %p45
        %p266 = pneg %p42
        %p267 = pneg %p66
        %p268 = pneg %p63
        %p269 = pneg %p87
        %p270 = pneg %p84
        %p271 = pneg %p108
        %p272 = pneg %p105
        %p273 = pneg %p129
        %p274 = pneg %p126
        %p275 = pneg %p155
        %p276 = pneg %p152
        %s277 = sand.u32 %s142, 1
        %s278 = scalar_lea.sflag [#allocation4], %s277
        %s279 = sand.u32 %s142, 1
        %s280 = smul.addr %s279, 8
        %s281 = scalar_lea.vmem [#allocation10], %s280
        %v282 = vld [vmem:[%s243] sm:$0xff]
        %v283 = vld [vmem:[#allocation5] sm:$0xff]
        %v284 = vld [vmem:[#allocation5 + $0x8] sm:$0xff]
        %v285 = vld [vmem:[#allocation5 + $0x10] sm:$0xff]
        %v286 = vld [vmem:[#allocation5 + $0x18] sm:$0xff]
        %v287 = vld [vmem:[#allocation7] sm:$0x1]
        %v288 = vlaneseq
        %v289 = vshrl.u32 %v288, 7
        %v290 = vsub.s32 0, %v289
        %v291 = vrot.slane %v287, %v290
        %vm292 = vcmask 261120
        %v294 = vsel %vm292, %v282, 0
        %296 = vmatprep.subr.mxu0 0.0
        %297 = vmatpush1.msra.mxu0 0.0
        %298 = vmatprep.subr.mxu0 0.0
        %299 = vmatpush1.msra.mxu0 0.0
        %300 = vmatprep.subr.mxu0 0.0
        %301 = vmatpush1.msra.mxu0 0.0
        %302 = vmatprep.subr.mxu0 0.0
        %303 = vmatpush1.msra.mxu0 0.0
        %304 = vmatprep.subr.mxu0 0.0
        %305 = vmatpush1.msra.mxu0 0.0
        %306 = vmatprep.subr.mxu0 0.0
        %307 = vmatpush1.msra.mxu0 0.0
        %308 = vmatprep.subr.mxu0 0.0
        %309 = vmatpush1.msra.mxu0 0.0
        %310 = vmatprep.subr.mxu0 0.0
        %311 = vmatpush1.msra.mxu0 0.0
        %312 = vmatprep.subr.mxu0 0.0
        %313 = vmatpush1.msra.mxu0 0.0
        %314 = vmatprep.subr.mxu0 0.0
        %315 = vmatpush1.msra.mxu0 0.0
        %316 = vmatprep.subr.mxu0 0.0
        %317 = vmatpush1.msra.mxu0 0.0
        %318 = vmatprep.subr.mxu0 0.0
        %319 = vmatpush1.msra.mxu0 0.0
        %320 = vmatprep.subr.mxu0 0.0
        %321 = vmatpush1.msra.mxu0 %v286
        %322 = vmatprep.subr.mxu0 0.0
        %323 = vmatpush1.msra.mxu0 %v285
        %324 = vmatprep.subr.mxu0 0.0
        %325 = vmatpush1.msra.mxu0 %v284
        %326 = vmatprep.subr.mxu0 0.0
        %327 = vmatpush1.msra.mxu0 %v283
        %328 = vmatprep.subr.mxu0 0.0
        %329 = vmatpush2.msra.mxu0 0.0
        %330 = vmatprep.subr.mxu0 0.0
        %331 = vmatpush2.msra.mxu0 0.0
        %332 = vmatprep.subr.mxu0 0.0
        %333 = vmatpush2.msra.mxu0 0.0
        %334 = vmatprep.subr.mxu0 0.0
        %335 = vmatpush2.msra.mxu0 0.0
        %336 = vmatprep.subr.mxu0 0.0
        %337 = vmatpush2.msra.mxu0 0.0
        %338 = vmatprep.subr.mxu0 0.0
        %339 = vmatpush2.msra.mxu0 0.0
        %340 = vmatprep.subr.mxu0 0.0
        %341 = vmatpush2.msra.mxu0 0.0
        %342 = vmatprep.subr.mxu0 0.0
        %343 = vmatpush2.msra.mxu0 0.0
        %344 = vmatprep.subr.mxu0 0.0
        %345 = vmatpush2.msra.mxu0 0.0
        %346 = vmatprep.subr.mxu0 0.0
        %347 = vmatpush2.msra.mxu0 0.0
        %348 = vmatprep.subr.mxu0 0.0
        %349 = vmatpush2.msra.mxu0 0.0
        %350 = vmatprep.subr.mxu0 0.0
        %351 = vmatpush2.msra.mxu0 0.0
        %352 = vmatprep.subr.mxu0 0.0
        %353 = vmatpush2.msra.mxu0 0.0
        %354 = vmatprep.subr.mxu0 0.0
        %355 = vmatpush2.msra.mxu0 0.0
        %356 = vmatprep.subr.mxu0 0.0
        %357 = vmatpush2.msra.mxu0 0.0
        %358 = vmatprep.subr.mxu0 0.0
        %359 = vmatpush2.msra.mxu0 0.0
        %360 = vmatprep.mubr.f32.mxu0 0.0
        %361 = vmatmul.mubr.f32.gmra.mxu0 %v294
        %v362 = vpop.f32.mrf.mxu0
        %v363 = vadd.f32 %v291, %v362
        %v364 = vpop.f32.mrf.mxu0
        %365 = vdwg.mxu0
        %366 = vadd.xlane.f32.xlu0 %v363
        %v367 = vpop.xlane.xlu0 %366
        %v368 = vmul.f32 %v363, %v363
        %369 = vadd.xlane.f32.xlu0 %v368
        %v370 = vpop.xlane.xlu0 %369
        %v371 = vmul.f32 %v367, 0.015625
        %v372 = vmul.f32 %v370, 0.015625
        %v373 = vmul.f32 %v371, %v371
        %v374 = vsub.f32 %v372, %v373
        %v375 = vmax.f32 %v374, 0.0
        %v376 = vadd.f32 %v375, 1e-05
        %v377 = vrsqrt.pop %v376
        %v378 = vsub.f32 %v363, %v371
        %v379 = vmul.f32 %v378, %v377
        %v380 = vld [vmem:[#allocation7 + $0x1] sm:$0x1]
        %v381 = vlaneseq
        %v382 = vshrl.u32 %v381, 7
        %v383 = vsub.s32 0, %v382
        %v384 = vrot.slane %v380, %v383
        %v385 = vmul.f32 %v379, %v384
        %v386 = vld [vmem:[#allocation7 + $0x2] sm:$0x1]
        %v387 = vlaneseq
        %v388 = vshrl.u32 %v387, 7
        %v389 = vsub.s32 0, %v388
        %v390 = vrot.slane %v386, %v389
        %v391 = vadd.f32 %v385, %v390
        %v392 = vmax.f32 %v391, 0.0
        %v393 = vld [vmem:[#allocation8] sm:$0xff]
        %v394 = vld [vmem:[#allocation8 + $0x8] sm:$0xff]
        %v395 = vld [vmem:[#allocation8 + $0x10] sm:$0xff]
        %v396 = vld [vmem:[#allocation8 + $0x18] sm:$0xff]
        %v397 = vld [vmem:[#allocation8 + $0x20] sm:$0xff]
        %v398 = vld [vmem:[#allocation8 + $0x28] sm:$0xff]
        %v399 = vld [vmem:[#allocation8 + $0x30] sm:$0xff]
        %v400 = vld [vmem:[#allocation8 + $0x38] sm:$0xff]
        %v401 = vld [vmem:[#allocation8 + $0x40] sm:$0xff]
        %v402 = vld [vmem:[#allocation8 + $0x48] sm:$0xff]
        %v403 = vld [vmem:[#allocation8 + $0x50] sm:$0xff]
        %v404 = vld [vmem:[#allocation8 + $0x58] sm:$0xff]
        %v405 = vld [vmem:[#allocation8 + $0x60] sm:$0xff]
        %v406 = vld [vmem:[#allocation8 + $0x68] sm:$0xff]
        %v407 = vld [vmem:[#allocation8 + $0x70] sm:$0xff]
        %v408 = vld [vmem:[#allocation8 + $0x78] sm:$0xff]
        %v409 = vld [vmem:[%s4] sm:$0x1]
        %v411 = vlaneseq
        %v412 = vshrl.u32 %v411, 7
        %v413 = vsub.s32 0, %v412
        %v414 = vrot.slane %v409, %v413
        %416 = vmatprep.subr.mxu0 0.0
        %417 = vmatpush1.msra.mxu0 %v408
        %418 = vmatprep.subr.mxu0 0.0
        %419 = vmatpush1.msra.mxu0 %v407
        %420 = vmatprep.subr.mxu0 0.0
        %421 = vmatpush1.msra.mxu0 %v406
        %422 = vmatprep.subr.mxu0 0.0
        %423 = vmatpush1.msra.mxu0 %v405
        %424 = vmatprep.subr.mxu0 0.0
        %425 = vmatpush1.msra.mxu0 %v404
        %426 = vmatprep.subr.mxu0 0.0
        %427 = vmatpush1.msra.mxu0 %v403
        %428 = vmatprep.subr.mxu0 0.0
        %429 = vmatpush1.msra.mxu0 %v402
        %430 = vmatprep.subr.mxu0 0.0
        %431 = vmatpush1.msra.mxu0 %v401
        %432 = vmatprep.subr.mxu0 0.0
        %433 = vmatpush1.msra.mxu0 %v400
        %434 = vmatprep.subr.mxu0 0.0
        %435 = vmatpush1.msra.mxu0 %v399
        %436 = vmatprep.subr.mxu0 0.0
        %437 = vmatpush1.msra.mxu0 %v398
        %438 = vmatprep.subr.mxu0 0.0
        %439 = vmatpush1.msra.mxu0 %v397
        %440 = vmatprep.subr.mxu0 0.0
        %441 = vmatpush1.msra.mxu0 %v396
        %442 = vmatprep.subr.mxu0 0.0
        %443 = vmatpush1.msra.mxu0 %v395
        %444 = vmatprep.subr.mxu0 0.0
        %445 = vmatpush1.msra.mxu0 %v394
        %446 = vmatprep.subr.mxu0 0.0
        %447 = vmatpush1.msra.mxu0 %v393
        %448 = vmatprep.subr.mxu0 0.0
        %449 = vmatpush2.msra.mxu0 0.0
        %450 = vmatprep.subr.mxu0 0.0
        %451 = vmatpush2.msra.mxu0 0.0
        %452 = vmatprep.subr.mxu0 0.0
        %453 = vmatpush2.msra.mxu0 0.0
        %454 = vmatprep.subr.mxu0 0.0
        %455 = vmatpush2.msra.mxu0 0.0
        %456 = vmatprep.subr.mxu0 0.0
        %457 = vmatpush2.msra.mxu0 0.0
        %458 = vmatprep.subr.mxu0 0.0
        %459 = vmatpush2.msra.mxu0 0.0
        %460 = vmatprep.subr.mxu0 0.0
        %461 = vmatpush2.msra.mxu0 0.0
        %462 = vmatprep.subr.mxu0 0.0
        %463 = vmatpush2.msra.mxu0 0.0
        %464 = vmatprep.subr.mxu0 0.0
        %465 = vmatpush2.msra.mxu0 0.0
        %466 = vmatprep.subr.mxu0 0.0
        %467 = vmatpush2.msra.mxu0 0.0
        %468 = vmatprep.subr.mxu0 0.0
        %469 = vmatpush2.msra.mxu0 0.0
        %470 = vmatprep.subr.mxu0 0.0
        %471 = vmatpush2.msra.mxu0 0.0
        %472 = vmatprep.subr.mxu0 0.0
        %473 = vmatpush2.msra.mxu0 0.0
        %474 = vmatprep.subr.mxu0 0.0
        %475 = vmatpush2.msra.mxu0 0.0
        %476 = vmatprep.subr.mxu0 0.0
        %477 = vmatpush2.msra.mxu0 0.0
        %478 = vmatprep.subr.mxu0 0.0
        %479 = vmatpush2.msra.mxu0 0.0
        %480 = vmatprep.mubr.f32.mxu0 0.0
        %481 = vmatmul.mubr.f32.gmra.mxu0 %v392
        %v482 = vpop.f32.mrf.mxu0
        %v483 = vadd.f32 %v414, %v482
        %v484 = vpop.f32.mrf.mxu0
        %485 = vdwg.mxu0
        %486 = vst [vmem:[%s281] sm:$0xff] %v483
        %s487 = sand.u32 %s142, 1
        %s488 = scalar_lea.sflag [#allocation4], %s487
        %s489 = sand.u32 %s142, 1
        %s490 = smul.addr %s489, 8
        %s491 = scalar_lea.vmem [#allocation10], %s490
        // Predicated region
        $region57: #{traj_decoder_apply.1} parent=39 // pred_check
          %p492 = pneg %p152
        $region58: #{traj_decoder_apply.1} parent=39 // pred_check_branch
          %494 = sbr.rel (%p492) target = $region60
        $region59: #{traj_decoder_apply.1} parent=39 // pred_region
          %s496 = ssub.s32 128, 128
          %497 = vsyncadd %s488, %s496
          %s498 = smul.addr %s24, 128
          %s499 = scalar_lea.hbm %s5, %s498
          %s501 = sshll.u32 %s491, 4
          %s502 = int_to_ptr.vmem [resolvable:$true] %s501
          %504 = dma.vmem_to_hbm [thread:$0]  %s502, 128, %s499, %s488
        $region60: #{traj_decoder_apply.1} parent=39 // pred_fallthru
          _
      $region40: #{traj_decoder_apply.1} parent=5 // pred_fallthru
        _
      %p505 = scmp.le.s32.totalorder 2, %s19
      // Predicated region
      $region61: #{traj_decoder_apply.1} parent=5 // pred_check
        %p506 = pneg %p505
      $region62: #{traj_decoder_apply.1} parent=5 // pred_check_branch
        %508 = sbr.rel (%p506) target = $region64
      $region63: #{traj_decoder_apply.1} parent=5 // pred_region
        %s509 = ssub.s32 %s19, 2
        // Predicated region
        $region65: #{traj_decoder_apply.1} parent=63 // pred_check
          %p510 = pneg %p158
        $region66: #{traj_decoder_apply.1} parent=63 // pred_check_branch
          %512 = sbr.rel (%p510) target = $region68
        $region67: #{traj_decoder_apply.1} parent=63 // pred_region
          %s513 = sand.u32 %s143, 1
          %s514 = scalar_lea.sflag [#allocation4], %s513
          %s515 = sand.u32 %s143, 1
          %s516 = smul.addr %s515, 8
          %s517 = scalar_lea.vmem [#allocation10], %s516
          %518 = dma.done %s514, 128
        $region68: #{traj_decoder_apply.1} parent=63 // pred_fallthru
          _
      $region64: #{traj_decoder_apply.1} parent=5 // pred_fallthru
        _
    $region6: #{traj_decoder_apply.1} parent=1 // loop_footer
      %s23 = sadd.s32 1, %s19
    $region7: #{traj_decoder_apply.1} parent=1 // loop_footer_branch
      %18 = sbr.rel target = $region3
    $region8: #{traj_decoder_apply.1} parent=1 // loop_exit
      _
    %519 = vsyncpa [#allocation3], 1
    %s520 = scalar_lea.sflag [#allocation3], 1
    %521 = vsyncpa %s520, 1
    %522 = vsyncpa [#allocation6], 1
    %523 = vsyncpa [#allocation9], 1
    %524 = vsyncpa [#allocation4], 1
    %s525 = scalar_lea.sflag [#allocation4], 1
    %526 = vsyncpa %s525, 1

</llo_original>
